<compile_context>
chip_gen: v7x
topology: tpu7x:2x2x1
jax: 0.10.0
libtpu: 0.0.40
codegen_flags: <defaults>
</compile_context>

<pallas_src>
import jax
import jax.numpy as jnp
from jax.experimental import pallas as pl
from jax.experimental.pallas import tpu as pltpu

METRICS = ("variance", "entropy", "sparsity")
INITIAL_THRESHOLDS = {"variance": 0.5, "entropy": 0.7, "sparsity": 0.3}
SENSITIVITY_INIT = 0.1


def _make_kernel(n_metrics):
    """Kernel over n_metrics full (R, C) tiles, single grid step."""

    def kernel(thr_ref, sens_ref, *refs):
        # thr_ref:  SMEM (n_metrics,) f32 -- per-metric thresholds
        # sens_ref: SMEM (1,) f32         -- shared sensitivity
        # refs[:n] : VMEM (R, C) f32 inputs, refs[n:] : VMEM (R, C) f32 outputs
        x_refs = refs[:n_metrics]
        o_refs = refs[n_metrics:]
        s = sens_ref[0]
        # Static Python unroll over metrics: a handful of VPU/EUP bundles total.
        for i in range(n_metrics):
            o_refs[i][...] = thr_ref[i] * jax.nn.sigmoid(s * x_refs[i][...])

    return kernel


def adaptive_thresholds_pallas(thresholds, sensitivity, complexities):
    """thresholds: dict[str, f32 scalar]; sensitivity: f32 scalar;
    complexities: dict[str, f32 array] (elementwise-adapted per metric).

    Returns dict[str, array]: adapted thresholds (elementwise) for present
    metrics, raw threshold scalar for absent metrics.
    """
    present = [m for m in METRICS if m in complexities]
    out = {}

    if present:
        n = len(present)
        xs = [jnp.asarray(complexities[m], dtype=jnp.float32) for m in present]
        thr_vec = jnp.asarray([thresholds[m] for m in present], dtype=jnp.float32)
        sens_vec = jnp.asarray([sensitivity], dtype=jnp.float32).reshape((1,))

        results = pl.pallas_call(
            _make_kernel(n),
            out_shape=tuple(
                jax.ShapeDtypeStruct(x.shape, jnp.float32) for x in xs
            ),
            in_specs=(
                [
                    pl.BlockSpec(memory_space=pltpu.MemorySpace.SMEM),  # thresholds
                    pl.BlockSpec(memory_space=pltpu.MemorySpace.SMEM),  # sensitivity
                ]
                + [pl.BlockSpec(memory_space=pltpu.MemorySpace.VMEM) for _ in xs]
            ),
            out_specs=tuple(
                pl.BlockSpec(memory_space=pltpu.MemorySpace.VMEM) for _ in xs
            ),
        )(thr_vec, sens_vec, *xs)

        for m, r in zip(present, results):
            out[m] = r

    # Metrics absent from `complexities` -> pass the threshold through unchanged.
    for m in METRICS:
        if m not in complexities:
            out[m] = jnp.asarray(thresholds[m], dtype=jnp.float32)

    return out


def _reference(thresholds, sensitivity, complexities):
    out = {}
    for m in METRICS:
        if m in complexities:
            out[m] = thresholds[m] * jax.nn.sigmoid(sensitivity * complexities[m])
        else:
            out[m] = jnp.asarray(thresholds[m], dtype=jnp.float32)
    return out


if __name__ == "__main__":
    # Deterministic parameter init (matches module __init__).
    thresholds = {k: jnp.float32(v) for k, v in INITIAL_THRESHOLDS.items()}
    sensitivity = jnp.float32(SENSITIVITY_INIT)

    # Deterministic example complexity maps: one (8, 128) f32 tensor per metric.
    key = jax.random.PRNGKey(0)
    R, C = 8, 128
    keys = jax.random.split(key, len(METRICS))
    complexities = {
        m: jax.random.uniform(k, (R, C), dtype=jnp.float32, minval=0.0, maxval=4.0)
        for m, k in zip(METRICS, keys)
    }

    adapted = adaptive_thresholds_pallas(thresholds, sensitivity, complexities)
    adapted = {k: jax.block_until_ready(v) for k, v in adapted.items()}

    # Check against the pure-JAX reference.
    ref = _reference(thresholds, sensitivity, complexities)
    for m in METRICS:
        assert adapted[m].shape == ref[m].shape
        assert jnp.allclose(adapted[m], ref[m], atol=1e-6, rtol=1e-6), m

    # Also exercise the "missing metric" path (pure glue, no kernel change).
    partial = {"variance": complexities["variance"]}
    adapted_p = adaptive_thresholds_pallas(thresholds, sensitivity, partial)
    ref_p = _reference(thresholds, sensitivity, partial)
    for m in METRICS:
        assert jnp.allclose(adapted_p[m], ref_p[m], atol=1e-6, rtol=1e-6), m

    print("KERNEL_OK")
</pallas_src>

<mosaic_0001>
module attributes {stable_mosaic.version = 11 : i64} {
  func.func @kernel(%arg0: memref<3xf32, #tpu.memory_space<smem>>, %arg1: memref<1xf32, #tpu.memory_space<smem>>, %arg2: memref<8x128xf32, #tpu.memory_space<vmem>>, %arg3: memref<8x128xf32, #tpu.memory_space<vmem>>, %arg4: memref<8x128xf32, #tpu.memory_space<vmem>>, %arg5: memref<8x128xf32, #tpu.memory_space<vmem>>, %arg6: memref<8x128xf32, #tpu.memory_space<vmem>>, %arg7: memref<8x128xf32, #tpu.memory_space<vmem>>) attributes {dimension_semantics = [], scalar_prefetch = 0 : i64, scratch_operands = 0 : i64, tpu.core_type = #tpu.core_type<tc>} {
    %c0 = arith.constant 0 : index
    %0 = memref.load %arg1[%c0] : memref<1xf32, #tpu.memory_space<smem>>
    %c0_0 = arith.constant 0 : index
    %1 = memref.load %arg0[%c0_0] : memref<3xf32, #tpu.memory_space<smem>>
    %c0_1 = arith.constant 0 : index
    %c0_2 = arith.constant 0 : index
    %2 = vector.load %arg2[%c0_1, %c0_2] : memref<8x128xf32, #tpu.memory_space<vmem>>, vector<8x128xf32>
    %3 = vector.broadcast %0 : f32 to vector<8x128xf32>
    %4 = arith.mulf %3, %2 : vector<8x128xf32>
    %5 = arith.negf %4 : vector<8x128xf32>
    %6 = math.exp %5 : vector<8x128xf32>
    %cst = arith.constant 1.000000e+00 : f32
    %7 = vector.broadcast %cst : f32 to vector<8x128xf32>
    %8 = arith.addf %7, %6 : vector<8x128xf32>
    %9 = arith.divf %7, %8 : vector<8x128xf32>
    %10 = vector.broadcast %1 : f32 to vector<8x128xf32>
    %11 = arith.mulf %10, %9 : vector<8x128xf32>
    %c0_3 = arith.constant 0 : index
    %c0_4 = arith.constant 0 : index
    %12 = vector.load %arg5[%c0_3, %c0_4] : memref<8x128xf32, #tpu.memory_space<vmem>>, vector<8x128xf32>
    tpu.vector_store %arg5[%c0_3, %c0_4], %11 {strides = array<i32>} : memref<8x128xf32, #tpu.memory_space<vmem>>, vector<8x128xf32>,
    %c1 = arith.constant 1 : index
    %13 = memref.load %arg0[%c1] : memref<3xf32, #tpu.memory_space<smem>>
    %c0_5 = arith.constant 0 : index
    %c0_6 = arith.constant 0 : index
    %14 = vector.load %arg3[%c0_5, %c0_6] : memref<8x128xf32, #tpu.memory_space<vmem>>, vector<8x128xf32>
    %15 = vector.broadcast %0 : f32 to vector<8x128xf32>
    %16 = arith.mulf %15, %14 : vector<8x128xf32>
    %17 = arith.negf %16 : vector<8x128xf32>
    %18 = math.exp %17 : vector<8x128xf32>
    %cst_7 = arith.constant 1.000000e+00 : f32
    %19 = vector.broadcast %cst_7 : f32 to vector<8x128xf32>
    %20 = arith.addf %19, %18 : vector<8x128xf32>
    %21 = arith.divf %19, %20 : vector<8x128xf32>
    %22 = vector.broadcast %13 : f32 to vector<8x128xf32>
    %23 = arith.mulf %22, %21 : vector<8x128xf32>
    %c0_8 = arith.constant 0 : index
    %c0_9 = arith.constant 0 : index
    %24 = vector.load %arg6[%c0_8, %c0_9] : memref<8x128xf32, #tpu.memory_space<vmem>>, vector<8x128xf32>
    tpu.vector_store %arg6[%c0_8, %c0_9], %23 {strides = array<i32>} : memref<8x128xf32, #tpu.memory_space<vmem>>, vector<8x128xf32>,
    %c2 = arith.constant 2 : index
    %25 = memref.load %arg0[%c2] : memref<3xf32, #tpu.memory_space<smem>>
    %c0_10 = arith.constant 0 : index
    %c0_11 = arith.constant 0 : index
    %26 = vector.load %arg4[%c0_10, %c0_11] : memref<8x128xf32, #tpu.memory_space<vmem>>, vector<8x128xf32>
    %27 = vector.broadcast %0 : f32 to vector<8x128xf32>
    %28 = arith.mulf %27, %26 : vector<8x128xf32>
    %29 = arith.negf %28 : vector<8x128xf32>
    %30 = math.exp %29 : vector<8x128xf32>
    %cst_12 = arith.constant 1.000000e+00 : f32
    %31 = vector.broadcast %cst_12 : f32 to vector<8x128xf32>
    %32 = arith.addf %31, %30 : vector<8x128xf32>
    %33 = arith.divf %31, %32 : vector<8x128xf32>
    %34 = vector.broadcast %25 : f32 to vector<8x128xf32>
    %35 = arith.mulf %34, %33 : vector<8x128xf32>
    %c0_13 = arith.constant 0 : index
    %c0_14 = arith.constant 0 : index
    %36 = vector.load %arg7[%c0_13, %c0_14] : memref<8x128xf32, #tpu.memory_space<vmem>>, vector<8x128xf32>
    tpu.vector_store %arg7[%c0_13, %c0_14], %35 {strides = array<i32>} : memref<8x128xf32, #tpu.memory_space<vmem>>, vector<8x128xf32>,
    return
  }
}

</mosaic_0001>

<llo_original>
// kernel: tpu_custom_call.1
$region0: #{tpu_custom_call.1}
  #allocation0 [shape = 'u32[]', space=smem, size = 0x4, offset = 0x4, fixed_abs, tag = 'smem constant byte address 0x4 - core index']
  #allocation1 [shape = 'u32[144,128]{1,0:T(1,128)}', space=vmem, size = 0x12000, scoped, tag = 'internal scratch']
  #allocation2 [shape = 'f32[1]{0:T(128)S(6)}', space=smem, size = 0x200, scoped, tag = 'scoped memory for tpu_custom_call.1']
  %s0 = inlined_call_operand.vmem [shape: f32[3], index: 0, kind: input, shape index: {}]
  %s1 = inlined_call_operand.<no memory space> [shape: f32[1], index: 1, kind: input, shape index: {}]
  %s2 = inlined_call_operand.hbm [shape: f32[8,128], index: 2, kind: input, shape index: {}]
  %s3 = inlined_call_operand.vmem [shape: f32[8,128], index: 3, kind: input, shape index: {}]
  %s4 = inlined_call_operand.hbm [shape: f32[8,128], index: 4, kind: input, shape index: {}]
  %s5 = inlined_call_operand.hbm [shape: f32[8,128], index: 5, kind: output, shape index: {0}]
  %s6 = inlined_call_operand.hbm [shape: f32[8,128], index: 6, kind: output, shape index: {1}]
  %s7 = inlined_call_operand.hbm [shape: f32[8,128], index: 7, kind: output, shape index: {2}]
  %8 = xla_tuple %s5, %s6, %s7
  %s9 = sld [smem:[#allocation0]]
  $region58: #{tpu_custom_call.1} parent=0
    _
  %s11 = ssub.s32 1, %s9
  %s12 = scalar_select 0, %s11, %s9
  %13 = sst [smem:[#allocation2]] %s1
  $region1: #{tpu_custom_call.1} parent=0
    #allocation3 [shape = 'u8[512]{0}', space=smem, size = 0x200, scoped, tag = 'input window, operand 0, single buffered']
    #allocation4 [shape = 's32[1]{0}', space=sflag, size = 0x4, scoped, tag = 'scoped memory for tpu_custom_call.1']
    #allocation5 [shape = 's32[1]{0}', space=sflag, size = 0x4, scoped, tag = 'scoped memory for tpu_custom_call.1']
    #allocation6 [shape = 's32[1]{0}', space=sflag, size = 0x4, scoped, tag = 'scoped memory for tpu_custom_call.1']
    #allocation7 [shape = 'u8[4096]{0}', space=vmem, size = 0x1000, scoped, tag = 'input window, operand 2, single buffered']
    #allocation8 [shape = 'u8[4096]{0}', space=vmem, size = 0x1000, scoped, tag = 'input window, operand 4, single buffered']
    #allocation9 [shape = 's32[1]{0}', space=sflag, size = 0x4, scoped, tag = 'scoped memory for tpu_custom_call.1']
    #allocation10 [shape = 'u8[4096]{0}', space=vmem, size = 0x1000, scoped, tag = 'output window, operand 0, single buffered']
    #allocation11 [shape = 'u8[4096]{0}', space=vmem, size = 0x1000, scoped, tag = 'output window, operand 1, single buffered']
    #allocation12 [shape = 's32[1]{0}', space=sflag, size = 0x4, scoped, tag = 'scoped memory for tpu_custom_call.1']
    #allocation13 [shape = 'u8[4096]{0}', space=vmem, size = 0x1000, scoped, tag = 'output window, operand 2, single buffered']
    %14 = vsyncpa [#allocation6], 0
    %15 = vsyncpa [#allocation4], 0
    %16 = vsyncpa [#allocation9], 0
    %17 = vsyncpa [#allocation5], 0
    %18 = vsyncpa [#allocation12], 0
    // Predicated region
    $region2: #{tpu_custom_call.1} parent=1 // pred_check
      _
    $region3: #{tpu_custom_call.1} parent=1 // pred_check_branch
      %20 = sbr.rel (0) target = $region5
    $region4: #{tpu_custom_call.1} parent=1 // pred_region
      %s22 = ssub.s32 16, 16
      %23 = vsyncadd [#allocation6], %s22
      %s25 = sshll.u32 %s0, 4
      %s26 = int_to_ptr.vmem [resolvable:$true] %s25
      %28 = dma.vmem_to_smem %s26, 16, [#allocation3], [#allocation6]
    $region5: #{tpu_custom_call.1} parent=1 // pred_fallthru
      _
    // Predicated region
    $region6: #{tpu_custom_call.1} parent=1 // pred_check
      _
    $region7: #{tpu_custom_call.1} parent=1 // pred_check_branch
      %30 = sbr.rel (0) target = $region9
    $region8: #{tpu_custom_call.1} parent=1 // pred_region
      _
    $region9: #{tpu_custom_call.1} parent=1 // pred_fallthru
      _
    // Predicated region
    $region10: #{tpu_custom_call.1} parent=1 // pred_check
      _
    $region11: #{tpu_custom_call.1} parent=1 // pred_check_branch
      %32 = sbr.rel (0) target = $region13
    $region12: #{tpu_custom_call.1} parent=1 // pred_region
      %s34 = ssub.s32 128, 128
      %35 = vsyncadd [#allocation4], %s34
      %s37 = sshll.u32 [#allocation7], 4
      %s38 = int_to_ptr.vmem [resolvable:$true] %s37
      %40 = dma.hbm_to_vmem [thread:$0]  %s2, 128, %s38, [#allocation4]
    $region13: #{tpu_custom_call.1} parent=1 // pred_fallthru
      _
    // Predicated region
    $region14: #{tpu_custom_call.1} parent=1 // pred_check
      _
    $region15: #{tpu_custom_call.1} parent=1 // pred_check_branch
      %42 = sbr.rel (0) target = $region17
    $region16: #{tpu_custom_call.1} parent=1 // pred_region
      _
    $region17: #{tpu_custom_call.1} parent=1 // pred_fallthru
      _
    // Predicated region
    $region18: #{tpu_custom_call.1} parent=1 // pred_check
      _
    $region19: #{tpu_custom_call.1} parent=1 // pred_check_branch
      %44 = sbr.rel (0) target = $region21
    $region20: #{tpu_custom_call.1} parent=1 // pred_region
      %s46 = ssub.s32 128, 128
      %47 = vsyncadd [#allocation9], %s46
      %s49 = sshll.u32 [#allocation8], 4
      %s50 = int_to_ptr.vmem [resolvable:$true] %s49
      %52 = dma.hbm_to_vmem [thread:$0]  %s4, 128, %s50, [#allocation9]
    $region21: #{tpu_custom_call.1} parent=1 // pred_fallthru
      _
    // Predicated region
    $region22: #{tpu_custom_call.1} parent=1 // pred_check
      _
    $region23: #{tpu_custom_call.1} parent=1 // pred_check_branch
      %54 = sbr.rel (0) target = $region25
    $region24: #{tpu_custom_call.1} parent=1 // pred_region
      %55 = dma.done [#allocation6], 16
    $region25: #{tpu_custom_call.1} parent=1 // pred_fallthru
      _
    // Predicated region
    $region26: #{tpu_custom_call.1} parent=1 // pred_check
      _
    $region27: #{tpu_custom_call.1} parent=1 // pred_check_branch
      %57 = sbr.rel (0) target = $region29
    $region28: #{tpu_custom_call.1} parent=1 // pred_region
      %58 = dma.done [#allocation4], 128
    $region29: #{tpu_custom_call.1} parent=1 // pred_fallthru
      _
    // Predicated region
    $region30: #{tpu_custom_call.1} parent=1 // pred_check
      _
    $region31: #{tpu_custom_call.1} parent=1 // pred_check_branch
      %60 = sbr.rel (0) target = $region33
    $region32: #{tpu_custom_call.1} parent=1 // pred_region
      %61 = dma.done [#allocation9], 128
    $region33: #{tpu_custom_call.1} parent=1 // pred_fallthru
      _
    %62 = sfence
    %s63 = sld [smem:[#allocation2]]
    %s64 = sld [smem:[#allocation3]]
    %v65 = vld [vmem:[#allocation7] sm:$0xff]
    %v66 = vstv %s63
    %v67 = vmul.f32 %v66, %v65
    %v68 = vxor.u32 %v67, 2147483648
    %v69 = vmul.f32 %v68, 1.442695
    %v70 = vpow.pop %v69
    %v71 = vadd.f32 %v70, 1.0
    %v72 = vrcp.pop %v71
    %v73 = vmul.f32 1.0, %v72
    %v74 = vstv %s64
    %v75 = vmul.f32 %v74, %v73
    %76 = vst [vmem:[#allocation10] sm:$0xff] %v75
    %s77 = sld [smem:[#allocation3 + $0x1]]
    %v78 = vld [vmem:[%s3] sm:$0xff]
    %v79 = vmul.f32 %v66, %v78
    %v80 = vxor.u32 %v79, 2147483648
    %v81 = vmul.f32 %v80, 1.442695
    %v82 = vpow.pop %v81
    %v83 = vadd.f32 %v82, 1.0
    %v84 = vrcp.pop %v83
    %v85 = vmul.f32 1.0, %v84
    %v86 = vstv %s77
    %v87 = vmul.f32 %v86, %v85
    %88 = vst [vmem:[#allocation11] sm:$0xff] %v87
    %s89 = sld [smem:[#allocation3 + $0x2]]
    %v90 = vld [vmem:[#allocation8] sm:$0xff]
    %v91 = vmul.f32 %v66, %v90
    %v92 = vxor.u32 %v91, 2147483648
    %v93 = vmul.f32 %v92, 1.442695
    %v94 = vpow.pop %v93
    %v95 = vadd.f32 %v94, 1.0
    %v96 = vrcp.pop %v95
    %v97 = vmul.f32 1.0, %v96
    %v98 = vstv %s89
    %v99 = vmul.f32 %v98, %v97
    %100 = vst [vmem:[#allocation13] sm:$0xff] %v99
    // Predicated region
    $region34: #{tpu_custom_call.1} parent=1 // pred_check
      _
    $region35: #{tpu_custom_call.1} parent=1 // pred_check_branch
      %102 = sbr.rel (0) target = $region37
    $region36: #{tpu_custom_call.1} parent=1 // pred_region
      %s104 = ssub.s32 128, 128
      %105 = vsyncadd [#allocation5], %s104
      %s107 = sshll.u32 [#allocation10], 4
      %s108 = int_to_ptr.vmem [resolvable:$true] %s107
      %110 = dma.vmem_to_hbm [thread:$0]  %s108, 128, %s5, [#allocation5]
    $region37: #{tpu_custom_call.1} parent=1 // pred_fallthru
      _
    // Predicated region
    $region38: #{tpu_custom_call.1} parent=1 // pred_check
      _
    $region39: #{tpu_custom_call.1} parent=1 // pred_check_branch
      %112 = sbr.rel (0) target = $region41
    $region40: #{tpu_custom_call.1} parent=1 // pred_region
      %s114 = ssub.s32 128, 128
      %115 = vsyncadd [#allocation12], %s114
      %s117 = sshll.u32 [#allocation11], 4
      %s118 = int_to_ptr.vmem [resolvable:$true] %s117
      %120 = dma.vmem_to_hbm [thread:$0]  %s118, 128, %s6, [#allocation12]
    $region41: #{tpu_custom_call.1} parent=1 // pred_fallthru
      _
    // Predicated region
    $region42: #{tpu_custom_call.1} parent=1 // pred_check
      _
    $region43: #{tpu_custom_call.1} parent=1 // pred_check_branch
      %122 = sbr.rel (0) target = $region45
    $region44: #{tpu_custom_call.1} parent=1 // pred_region
      %s124 = ssub.s32 128, 128
      %125 = vsyncadd [#allocation12], %s124
      %s127 = sshll.u32 [#allocation13], 4
      %s128 = int_to_ptr.vmem [resolvable:$true] %s127
      %130 = dma.vmem_to_hbm [thread:$0]  %s128, 128, %s7, [#allocation12]
    $region45: #{tpu_custom_call.1} parent=1 // pred_fallthru
      _
    // Predicated region
    $region46: #{tpu_custom_call.1} parent=1 // pred_check
      _
    $region47: #{tpu_custom_call.1} parent=1 // pred_check_branch
      %132 = sbr.rel (0) target = $region49
    $region48: #{tpu_custom_call.1} parent=1 // pred_region
      %133 = dma.done [#allocation5], 128
    $region49: #{tpu_custom_call.1} parent=1 // pred_fallthru
      _
    // Predicated region
    $region50: #{tpu_custom_call.1} parent=1 // pred_check
      _
    $region51: #{tpu_custom_call.1} parent=1 // pred_check_branch
      %135 = sbr.rel (0) target = $region53
    $region52: #{tpu_custom_call.1} parent=1 // pred_region
      %136 = dma.done [#allocation12], 128
    $region53: #{tpu_custom_call.1} parent=1 // pred_fallthru
      _
    // Predicated region
    $region54: #{tpu_custom_call.1} parent=1 // pred_check
      _
    $region55: #{tpu_custom_call.1} parent=1 // pred_check_branch
      %138 = sbr.rel (0) target = $region57
    $region56: #{tpu_custom_call.1} parent=1 // pred_region
      %139 = dma.done [#allocation12], 128
    $region57: #{tpu_custom_call.1} parent=1 // pred_fallthru
      _
    %140 = vsyncpa [#allocation4], 1
    %141 = vsyncpa [#allocation9], 1
    %142 = vsyncpa [#allocation5], 1
    %143 = vsyncpa [#allocation12], 1
    %144 = vsyncpa [#allocation6], 1

</llo_original>
